<compile_context>
chip_gen: v5e
topology: v5e:2x2
jax: 0.10.0
libtpu: 0.0.40
codegen_flags: <defaults>
</compile_context>

<pallas_src>
import numpy as np
import jax
import jax.numpy as jnp
from jax.experimental import pallas as pl
from jax.experimental.pallas import tpu as pltpu


# ------------------------------ fused kernel ------------------------------- #
# All refs are 2-D, channels(-packed) on sublanes, pixels on lanes.
#   high_ref : (bpack*Ch, tile)         bf16
#   low_ref  : (bpack*Cl, Hl*Wl)        bf16   (whole low-res slab, resident)
#   r2t_ref  : (Hl*Wl, tile)            f32    (columns of kron(Rh,Rw)^T)
#   weights  : block-diagonal kron(I_bpack, w), biases (bpack*Ch, 1)
def _fused_kernel(high_ref, low_ref, r2t_ref,
                  wlo_ref, blo_ref,
                  w1h_ref, w1l_ref, b1_ref,
                  w2_ref, b2_ref,
                  wfh_ref, wfl_ref, bf_ref,
                  out_ref):
    f32 = jnp.float32
    h = high_ref[...].astype(f32)                                   # (BC, T)
    lo = low_ref[...].astype(f32)                                   # (BCl, HlWl)

    # low-res branch: 1x1 conv (commuted in front of the interp; exact since
    # bilinear rows sum to 1) then combined bilinear upsample for this tile.
    lw = jnp.dot(wlo_ref[...], lo, preferred_element_type=f32)      # (BC, HlWl)
    lc = jnp.dot(lw, r2t_ref[...], preferred_element_type=f32) + blo_ref[...]

    # attention: conv(2Ch->Ch)+BN(folded)+ReLU  (concat as two split dots)
    z1 = (jnp.dot(w1h_ref[...], h, preferred_element_type=f32)
          + jnp.dot(w1l_ref[...], lc, preferred_element_type=f32)
          + b1_ref[...])
    a1 = jnp.maximum(z1, 0.0)
    # attention: conv(Ch->Ch) + Sigmoid
    attn = jax.nn.sigmoid(
        jnp.dot(w2_ref[...], a1, preferred_element_type=f32) + b2_ref[...])
    weighted = lc * attn
    # final: conv(2Ch->Ch)+BN(folded)+ReLU
    zf = (jnp.dot(wfh_ref[...], h, preferred_element_type=f32)
          + jnp.dot(wfl_ref[...], weighted, preferred_element_type=f32)
          + bf_ref[...])
    out_ref[...] = jnp.maximum(zf, 0.0).astype(out_ref.dtype)


# ------------------------------ tiling helpers ----------------------------- #

def _pick_tile(hw, *, prefer_split, max_tile):
    """Largest 128-multiple divisor of hw (capped); split once if the grid
    would otherwise have a single step (v7x megacore)."""
    t = (min(max_tile, hw) // 128) * 128
    while t >= 128 and hw % t != 0:
        t -= 128
    if t < 128:
        return hw                          # no 128-multiple divisor: full rows
    if prefer_split and hw // t < 2:
        for cand in (t // 2, t - 128):
            if cand >= 128 and cand % 128 == 0 and hw % cand == 0:
                return cand
    return t


def _vmem_limit(bc, bcl, hlwl, tile):
    per_step = (2 * bc * tile * 2 * 2        # high + out (bf16), double-buffered
                + 2 * hlwl * tile * 4        # R2^T tile (f32), double-buffered
                + 2 * bcl * hlwl * 2         # low slab (bf16), double-buffered
                + 12 * bc * tile * 4)        # live f32 intermediates
    if per_step <= 12 * 1024 * 1024:         # fits v5e's 16 MiB default scoped VMEM
        return None
    try:
        cap = int(pltpu.get_tpu_info().vmem_capacity_bytes) * 3 // 4
    except Exception:
        cap = 48 * 1024 * 1024               # conservative headroom (v7x: 64 MiB)
    return min(2 * per_step, cap)


# ------------------------------- pallas_call ------------------------------- #

def attention_fusion_pallas(high_p, low_p, kp, *, max_tile=16384):
    nb, bc, hw = high_p.shape
    _, bcl, hlwl = low_p.shape
    tile = _pick_tile(hw, prefer_split=(nb < 2), max_tile=max_tile)
    grid = (nb, hw // tile)

    def full2(arr):
        return pl.BlockSpec(arr.shape, lambda i, j: (0, 0))

    in_specs = [
        pl.BlockSpec((None, bc, tile), lambda i, j: (i, 0, j)),    # high tile
        pl.BlockSpec((None, bcl, hlwl), lambda i, j: (i, 0, 0)),   # low slab
        pl.BlockSpec((hlwl, tile), lambda i, j: (0, j)),           # R2^T cols
        full2(kp['wlo']), full2(kp['blo']),
        full2(kp['w1h']), full2(kp['w1l']), full2(kp['b1']),
        full2(kp['w2']), full2(kp['b2']),
        full2(kp['wfh']), full2(kp['wfl']), full2(kp['bf']),
    ]
    out_specs = pl.BlockSpec((None, bc, tile), lambda i, j: (i, 0, j))

    return pl.pallas_call(
        _fused_kernel,
        out_shape=jax.ShapeDtypeStruct((nb, bc, hw), jnp.bfloat16),
        grid_spec=pltpu.PrefetchScalarGridSpec(
            num_scalar_prefetch=0, grid=grid,
            in_specs=in_specs, out_specs=out_specs),
        compiler_params=pltpu.CompilerParams(
            dimension_semantics=("parallel", "parallel"),
            vmem_limit_bytes=_vmem_limit(bc, bcl, hlwl, tile)),
    )(high_p, low_p, kp['r2t'], kp['wlo'], kp['blo'],
      kp['w1h'], kp['w1l'], kp['b1'],
      kp['w2'], kp['b2'],
      kp['wfh'], kp['wfl'], kp['bf'])


# ------------------------------- glue (host) ------------------------------- #

def _interp_matrix(out_size, in_size):
    """PyTorch bilinear, align_corners=False, as a (out, in) matrix."""
    R = np.zeros((out_size, in_size), dtype=np.float32)
    if out_size == in_size:
        np.fill_diagonal(R, 1.0)
        return R
    scale = in_size / out_size
    for o in range(out_size):
        src = max((o + 0.5) * scale - 0.5, 0.0)
        i0 = min(int(np.floor(src)), in_size - 1)
        i1 = min(i0 + 1, in_size - 1)
        l1 = src - i0
        R[o, i0] += 1.0 - l1
        R[o, i1] += l1
    return R


def _fold_bn(w, b, gamma, beta, mean, var, eps=1e-5):
    """Fold eval-mode BatchNorm into a preceding (Cout, Cin) 1x1 conv."""
    w, b = np.asarray(w, np.float32), np.asarray(b, np.float32)
    gamma, beta = np.asarray(gamma, np.float32), np.asarray(beta, np.float32)
    mean, var = np.asarray(mean, np.float32), np.asarray(var, np.float32)
    s = gamma / np.sqrt(var + eps)
    return w * s[:, None], b * s + (beta - mean * s)


def build_kernel_params(raw, Rh, Rw, *, N, Ch, Cl):
    """Fold BN, build block-diagonal (batch-packed) weights and kron(Rh,Rw)^T."""
    bpack = 1
    if Ch < 8 and 8 % Ch == 0 and N % (8 // Ch) == 0:
        bpack = min(8 // Ch, N)

    w1e, b1e = _fold_bn(raw['w1'], raw['b1'], raw['g1'], raw['be1'],
                        raw['m1'], raw['v1'])
    wfe, bfe = _fold_bn(raw['wf'], raw['bf'], raw['gf'], raw['bef'],
                        raw['mf'], raw['vf'])

    eye = np.eye(bpack, dtype=np.float32)

    def bd(w):                                     # kron(I_bpack, w)
        return jnp.asarray(np.kron(eye, np.asarray(w, np.float32)))

    def bias(b):
        return jnp.asarray(np.tile(np.asarray(b, np.float32), bpack)
                           .reshape(bpack * Ch, 1))

    r2t = jnp.asarray(np.kron(Rh, Rw).T.astype(np.float32))   # (Hl*Wl, H*W)

    return dict(
        bpack=bpack, r2t=r2t,
        wlo=bd(raw['w_low']), blo=bias(raw['b_low']),
        w1h=bd(w1e[:, :Ch]), w1l=bd(w1e[:, Ch:]), b1=bias(b1e),
        w2=bd(raw['w2']), b2=bias(raw['b2']),
        wfh=bd(wfe[:, :Ch]), wfl=bd(wfe[:, Ch:]), bf=bias(bfe),
    )


def attention_fusion_forward(high_nchw, low_nchw, kp):
    N, Ch, H, W = high_nchw.shape
    _, Cl, Hl, Wl = low_nchw.shape
    bpack = kp['bpack']
    nb = N // bpack
    # bf16 activations (memory-bound kernel) + free NCHW reinterpretations that
    # pack bpack images into the sublane axis.
    high_p = high_nchw.astype(jnp.bfloat16).reshape(nb, bpack * Ch, H * W)
    low_p = low_nchw.astype(jnp.bfloat16).reshape(nb, bpack * Cl, Hl * Wl)
    out_p = attention_fusion_pallas(high_p, low_p, kp)
    return out_p.reshape(N, Ch, H, W)


# --------------------------------- main ------------------------------------ #

if __name__ == "__main__":
    key = jax.random.PRNGKey(0)
    ks = jax.random.split(key, 20)

    N, Ch, Cl = 2, 4, 8            # high_res_channels=4, low_res_channels=8
    H, W, Hl, Wl = 16, 16, 8, 8

    high = jax.random.normal(ks[0], (N, Ch, H, W), jnp.float32)
    low = jax.random.normal(ks[1], (N, Cl, Hl, Wl), jnp.float32)

    # --- deterministic synthetic parameters, PyTorch (Cout, Cin) layout ---
    raw = dict(
        w_low=0.2 * jax.random.normal(ks[2], (Ch, Cl), jnp.float32),
        b_low=0.1 * jax.random.normal(ks[3], (Ch,), jnp.float32),
        w1=0.2 * jax.random.normal(ks[4], (Ch, 2 * Ch), jnp.float32),
        b1=0.1 * jax.random.normal(ks[5], (Ch,), jnp.float32),
        g1=1.0 + 0.1 * jax.random.normal(ks[6], (Ch,), jnp.float32),
        be1=0.1 * jax.random.normal(ks[7], (Ch,), jnp.float32),
        m1=0.05 * jax.random.normal(ks[14], (Ch,), jnp.float32),
        v1=1.0 + 0.1 * jax.random.uniform(ks[15], (Ch,), jnp.float32),
        w2=0.2 * jax.random.normal(ks[8], (Ch, Ch), jnp.float32),
        b2=0.1 * jax.random.normal(ks[9], (Ch,), jnp.float32),
        wf=0.2 * jax.random.normal(ks[10], (Ch, 2 * Ch), jnp.float32),
        bf=0.1 * jax.random.normal(ks[11], (Ch,), jnp.float32),
        gf=1.0 + 0.1 * jax.random.normal(ks[12], (Ch,), jnp.float32),
        bef=0.1 * jax.random.normal(ks[13], (Ch,), jnp.float32),
        mf=0.05 * jax.random.normal(ks[16], (Ch,), jnp.float32),
        vf=1.0 + 0.1 * jax.random.uniform(ks[17], (Ch,), jnp.float32),
    )

    Rh = _interp_matrix(H, Hl)
    Rw = _interp_matrix(W, Wl)

    kp = build_kernel_params(raw, Rh, Rw, N=N, Ch=Ch, Cl=Cl)
    out = attention_fusion_forward(high, low, kp)
    out = jax.block_until_ready(out)
    assert out.shape == (N, Ch, H, W)

    # --- correctness check vs pure-JAX reference in the ORIGINAL op order ---
    # (reference from the same bf16-quantized activations the kernel consumed)
    hi = jax.lax.Precision.HIGHEST
    high_q = high.astype(jnp.bfloat16).astype(jnp.float32)
    low_q = low.astype(jnp.bfloat16).astype(jnp.float32)

    w1e, b1e = _fold_bn(raw['w1'], raw['b1'], raw['g1'], raw['be1'],
                        raw['m1'], raw['v1'])
    wfe, bfe = _fold_bn(raw['wf'], raw['bf'], raw['gf'], raw['bef'],
                        raw['mf'], raw['vf'])
    w1e, b1e, wfe, bfe = map(jnp.asarray, (w1e, b1e, wfe, bfe))

    low_up = jnp.einsum('hp,wq,ncpq->nchw', jnp.asarray(Rh), jnp.asarray(Rw),
                        low_q, precision=hi)
    low_c = (jnp.einsum('oc,nchw->nohw', raw['w_low'], low_up, precision=hi)
             + raw['b_low'][None, :, None, None])
    z1 = (jnp.einsum('oc,nchw->nohw', w1e[:, :Ch], high_q, precision=hi)
          + jnp.einsum('oc,nchw->nohw', w1e[:, Ch:], low_c, precision=hi)
          + b1e[None, :, None, None])
    a1 = jnp.maximum(z1, 0.0)
    attn = jax.nn.sigmoid(jnp.einsum('oc,nchw->nohw', raw['w2'], a1, precision=hi)
                          + raw['b2'][None, :, None, None])
    weighted = low_c * attn
    zf = (jnp.einsum('oc,nchw->nohw', wfe[:, :Ch], high_q, precision=hi)
          + jnp.einsum('oc,nchw->nohw', wfe[:, Ch:], weighted, precision=hi)
          + bfe[None, :, None, None])
    ref = jnp.maximum(zf, 0.0)

    np.testing.assert_allclose(np.asarray(out.astype(jnp.float32)),
                               np.asarray(ref), rtol=2e-2, atol=2e-2)
    print("KERNEL_OK")
</pallas_src>

<mosaic_0001>
module attributes {stable_mosaic.version = 11 : i64} {
  func.func @_fused_kernel(%arg0: i32, %arg1: i32, %arg2: memref<1x8x128xbf16, #tpu.memory_space<vmem>>, %arg3: memref<1x16x64xbf16, #tpu.memory_space<vmem>>, %arg4: memref<64x128xf32, #tpu.memory_space<vmem>>, %arg5: memref<8x16xf32, #tpu.memory_space<vmem>>, %arg6: memref<8x1xf32, #tpu.memory_space<vmem>>, %arg7: memref<8x8xf32, #tpu.memory_space<vmem>>, %arg8: memref<8x8xf32, #tpu.memory_space<vmem>>, %arg9: memref<8x1xf32, #tpu.memory_space<vmem>>, %arg10: memref<8x8xf32, #tpu.memory_space<vmem>>, %arg11: memref<8x1xf32, #tpu.memory_space<vmem>>, %arg12: memref<8x8xf32, #tpu.memory_space<vmem>>, %arg13: memref<8x8xf32, #tpu.memory_space<vmem>>, %arg14: memref<8x1xf32, #tpu.memory_space<vmem>>, %arg15: memref<1x8x128xbf16, #tpu.memory_space<vmem>>) attributes {dimension_semantics = [#tpu.dimension_semantics<parallel>, #tpu.dimension_semantics<parallel>], iteration_bounds = array<i64: 1, 2>, scalar_prefetch = 0 : i64, scratch_operands = 0 : i64, tpu.core_type = #tpu.core_type<tc>, window_params = [{transform_indices = @transform_0, window_bounds = array<i64: 1, 8, 128>}, {transform_indices = @transform_1, window_bounds = array<i64: 1, 16, 64>}, {transform_indices = @transform_2, window_bounds = array<i64: 64, 128>}, {pipeline_mode = #tpu.pipeline_mode<synchronous>, transform_indices = @transform_3, window_bounds = array<i64: 8, 16>}, {pipeline_mode = #tpu.pipeline_mode<synchronous>, transform_indices = @transform_4, window_bounds = array<i64: 8, 1>}, {pipeline_mode = #tpu.pipeline_mode<synchronous>, transform_indices = @transform_5, window_bounds = array<i64: 8, 8>}, {pipeline_mode = #tpu.pipeline_mode<synchronous>, transform_indices = @transform_6, window_bounds = array<i64: 8, 8>}, {pipeline_mode = #tpu.pipeline_mode<synchronous>, transform_indices = @transform_7, window_bounds = array<i64: 8, 1>}, {pipeline_mode = #tpu.pipeline_mode<synchronous>, transform_indices = @transform_8, window_bounds = array<i64: 8, 8>}, {pipeline_mode = #tpu.pipeline_mode<synchronous>, transform_indices = @transform_9, window_bounds = array<i64: 8, 1>}, {pipeline_mode = #tpu.pipeline_mode<synchronous>, transform_indices = @transform_10, window_bounds = array<i64: 8, 8>}, {pipeline_mode = #tpu.pipeline_mode<synchronous>, transform_indices = @transform_11, window_bounds = array<i64: 8, 8>}, {pipeline_mode = #tpu.pipeline_mode<synchronous>, transform_indices = @transform_12, window_bounds = array<i64: 8, 1>}, {transform_indices = @transform_13, window_bounds = array<i64: 1, 8, 128>}]} {
    %c0 = arith.constant 0 : index
    %c0_0 = arith.constant 0 : index
    %c0_1 = arith.constant 0 : index
    %0 = vector.load %arg2[%c0, %c0_0, %c0_1] : memref<1x8x128xbf16, #tpu.memory_space<vmem>>, vector<1x8x128xbf16>
    %1 = vector.shape_cast %0 : vector<1x8x128xbf16> to vector<8x128xbf16>
    %2 = arith.extf %1 : vector<8x128xbf16> to vector<8x128xf32>
    %c0_2 = arith.constant 0 : index
    %c0_3 = arith.constant 0 : index
    %c0_4 = arith.constant 0 : index
    %3 = vector.load %arg3[%c0_2, %c0_3, %c0_4] : memref<1x16x64xbf16, #tpu.memory_space<vmem>>, vector<1x16x64xbf16>
    %4 = vector.shape_cast %3 : vector<1x16x64xbf16> to vector<16x64xbf16>
    %5 = arith.extf %4 : vector<16x64xbf16> to vector<16x64xf32>
    %c0_5 = arith.constant 0 : index
    %c0_6 = arith.constant 0 : index
    %6 = vector.load %arg5[%c0_5, %c0_6] : memref<8x16xf32, #tpu.memory_space<vmem>>, vector<8x16xf32>
    %cst = arith.constant dense<0.000000e+00> : vector<8x64xf32>
    %7 = tpu.matmul %6, %5, %cst {dimension_numbers = #tpu.dot_dimension_numbers<[1], [0], [0], [1], [0, 0, 1, 1], [], []>} : vector<8x16xf32>, vector<16x64xf32>, vector<8x64xf32> -> vector<8x64xf32>
    %c0_7 = arith.constant 0 : index
    %c0_8 = arith.constant 0 : index
    %8 = vector.load %arg4[%c0_7, %c0_8] : memref<64x128xf32, #tpu.memory_space<vmem>>, vector<64x128xf32>
    %cst_9 = arith.constant dense<0.000000e+00> : vector<8x128xf32>
    %9 = tpu.matmul %7, %8, %cst_9 {dimension_numbers = #tpu.dot_dimension_numbers<[1], [0], [0], [1], [0, 0, 1, 1], [], []>} : vector<8x64xf32>, vector<64x128xf32>, vector<8x128xf32> -> vector<8x128xf32>
    %c0_10 = arith.constant 0 : index
    %c0_11 = arith.constant 0 : index
    %10 = vector.load %arg6[%c0_10, %c0_11] : memref<8x1xf32, #tpu.memory_space<vmem>>, vector<8x1xf32>
    %11 = vector.broadcast %10 : vector<8x1xf32> to vector<8x128xf32>
    %12 = arith.addf %9, %11 : vector<8x128xf32>
    %c0_12 = arith.constant 0 : index
    %c0_13 = arith.constant 0 : index
    %13 = vector.load %arg7[%c0_12, %c0_13] : memref<8x8xf32, #tpu.memory_space<vmem>>, vector<8x8xf32>
    %cst_14 = arith.constant dense<0.000000e+00> : vector<8x128xf32>
    %14 = tpu.matmul %13, %2, %cst_14 {dimension_numbers = #tpu.dot_dimension_numbers<[1], [0], [0], [1], [0, 0, 1, 1], [], []>} : vector<8x8xf32>, vector<8x128xf32>, vector<8x128xf32> -> vector<8x128xf32>
    %c0_15 = arith.constant 0 : index
    %c0_16 = arith.constant 0 : index
    %15 = vector.load %arg8[%c0_15, %c0_16] : memref<8x8xf32, #tpu.memory_space<vmem>>, vector<8x8xf32>
    %cst_17 = arith.constant dense<0.000000e+00> : vector<8x128xf32>
    %16 = tpu.matmul %15, %12, %cst_17 {dimension_numbers = #tpu.dot_dimension_numbers<[1], [0], [0], [1], [0, 0, 1, 1], [], []>} : vector<8x8xf32>, vector<8x128xf32>, vector<8x128xf32> -> vector<8x128xf32>
    %17 = arith.addf %14, %16 : vector<8x128xf32>
    %c0_18 = arith.constant 0 : index
    %c0_19 = arith.constant 0 : index
    %18 = vector.load %arg9[%c0_18, %c0_19] : memref<8x1xf32, #tpu.memory_space<vmem>>, vector<8x1xf32>
    %19 = vector.broadcast %18 : vector<8x1xf32> to vector<8x128xf32>
    %20 = arith.addf %17, %19 : vector<8x128xf32>
    %cst_20 = arith.constant 0.000000e+00 : f32
    %21 = vector.broadcast %cst_20 : f32 to vector<8x128xf32>
    %22 = arith.maximumf %20, %21 : vector<8x128xf32>
    %c0_21 = arith.constant 0 : index
    %c0_22 = arith.constant 0 : index
    %23 = vector.load %arg10[%c0_21, %c0_22] : memref<8x8xf32, #tpu.memory_space<vmem>>, vector<8x8xf32>
    %cst_23 = arith.constant dense<0.000000e+00> : vector<8x128xf32>
    %24 = tpu.matmul %23, %22, %cst_23 {dimension_numbers = #tpu.dot_dimension_numbers<[1], [0], [0], [1], [0, 0, 1, 1], [], []>} : vector<8x8xf32>, vector<8x128xf32>, vector<8x128xf32> -> vector<8x128xf32>
    %c0_24 = arith.constant 0 : index
    %c0_25 = arith.constant 0 : index
    %25 = vector.load %arg11[%c0_24, %c0_25] : memref<8x1xf32, #tpu.memory_space<vmem>>, vector<8x1xf32>
    %26 = vector.broadcast %25 : vector<8x1xf32> to vector<8x128xf32>
    %27 = arith.addf %24, %26 : vector<8x128xf32>
    %28 = arith.negf %27 : vector<8x128xf32>
    %29 = math.exp %28 : vector<8x128xf32>
    %cst_26 = arith.constant 1.000000e+00 : f32
    %30 = vector.broadcast %cst_26 : f32 to vector<8x128xf32>
    %31 = arith.addf %30, %29 : vector<8x128xf32>
    %32 = arith.divf %30, %31 : vector<8x128xf32>
    %33 = arith.mulf %12, %32 : vector<8x128xf32>
    %c0_27 = arith.constant 0 : index
    %c0_28 = arith.constant 0 : index
    %34 = vector.load %arg12[%c0_27, %c0_28] : memref<8x8xf32, #tpu.memory_space<vmem>>, vector<8x8xf32>
    %cst_29 = arith.constant dense<0.000000e+00> : vector<8x128xf32>
    %35 = tpu.matmul %34, %2, %cst_29 {dimension_numbers = #tpu.dot_dimension_numbers<[1], [0], [0], [1], [0, 0, 1, 1], [], []>} : vector<8x8xf32>, vector<8x128xf32>, vector<8x128xf32> -> vector<8x128xf32>
    %c0_30 = arith.constant 0 : index
    %c0_31 = arith.constant 0 : index
    %36 = vector.load %arg13[%c0_30, %c0_31] : memref<8x8xf32, #tpu.memory_space<vmem>>, vector<8x8xf32>
    %cst_32 = arith.constant dense<0.000000e+00> : vector<8x128xf32>
    %37 = tpu.matmul %36, %33, %cst_32 {dimension_numbers = #tpu.dot_dimension_numbers<[1], [0], [0], [1], [0, 0, 1, 1], [], []>} : vector<8x8xf32>, vector<8x128xf32>, vector<8x128xf32> -> vector<8x128xf32>
    %38 = arith.addf %35, %37 : vector<8x128xf32>
    %c0_33 = arith.constant 0 : index
    %c0_34 = arith.constant 0 : index
    %39 = vector.load %arg14[%c0_33, %c0_34] : memref<8x1xf32, #tpu.memory_space<vmem>>, vector<8x1xf32>
    %40 = vector.broadcast %39 : vector<8x1xf32> to vector<8x128xf32>
    %41 = arith.addf %38, %40 : vector<8x128xf32>
    %cst_35 = arith.constant 0.000000e+00 : f32
    %42 = vector.broadcast %cst_35 : f32 to vector<8x128xf32>
    %43 = arith.maximumf %41, %42 : vector<8x128xf32>
    %44 = arith.truncf %43 : vector<8x128xf32> to vector<8x128xbf16>
    %c0_36 = arith.constant 0 : index
    %c0_37 = arith.constant 0 : index
    %c0_38 = arith.constant 0 : index
    %45 = vector.load %arg15[%c0_36, %c0_37, %c0_38] : memref<1x8x128xbf16, #tpu.memory_space<vmem>>, vector<1x8x128xbf16>
    %46 = vector.shape_cast %45 : vector<1x8x128xbf16> to vector<8x128xbf16>
    %47 = vector.shape_cast %44 : vector<8x128xbf16> to vector<1x8x128xbf16>
    tpu.vector_store %arg15[%c0_36, %c0_37, %c0_38], %47 {strides = array<i32>} : memref<1x8x128xbf16, #tpu.memory_space<vmem>>, vector<1x8x128xbf16>,
    return
  }
  func.func @transform_0(%arg0: i32, %arg1: i32) -> (i32, i32, i32) {
    %c0_i32 = arith.constant 0 : i32
    %c0_i32_0 = arith.constant 0 : i32
    return %arg0, %c0_i32, %arg1 : i32, i32, i32
  }
  func.func @transform_1(%arg0: i32, %arg1: i32) -> (i32, i32, i32) {
    %c0_i32 = arith.constant 0 : i32
    %c0_i32_0 = arith.constant 0 : i32
    %c0_i32_1 = arith.constant 0 : i32
    return %arg0, %c0_i32, %c0_i32_0 : i32, i32, i32
  }
  func.func @transform_2(%arg0: i32, %arg1: i32) -> (i32, i32) {
    %c0_i32 = arith.constant 0 : i32
    %c0_i32_0 = arith.constant 0 : i32
    return %c0_i32, %arg1 : i32, i32
  }
  func.func @transform_3(%arg0: i32, %arg1: i32) -> (i32, i32) {
    %c0_i32 = arith.constant 0 : i32
    %c0_i32_0 = arith.constant 0 : i32
    %c0_i32_1 = arith.constant 0 : i32
    return %c0_i32, %c0_i32_0 : i32, i32
  }
  func.func @transform_4(%arg0: i32, %arg1: i32) -> (i32, i32) {
    %c0_i32 = arith.constant 0 : i32
    %c0_i32_0 = arith.constant 0 : i32
    %c0_i32_1 = arith.constant 0 : i32
    return %c0_i32, %c0_i32_0 : i32, i32
  }
  func.func @transform_5(%arg0: i32, %arg1: i32) -> (i32, i32) {
    %c0_i32 = arith.constant 0 : i32
    %c0_i32_0 = arith.constant 0 : i32
    %c0_i32_1 = arith.constant 0 : i32
    return %c0_i32, %c0_i32_0 : i32, i32
  }
  func.func @transform_6(%arg0: i32, %arg1: i32) -> (i32, i32) {
    %c0_i32 = arith.constant 0 : i32
    %c0_i32_0 = arith.constant 0 : i32
    %c0_i32_1 = arith.constant 0 : i32
    return %c0_i32, %c0_i32_0 : i32, i32
  }
  func.func @transform_7(%arg0: i32, %arg1: i32) -> (i32, i32) {
    %c0_i32 = arith.constant 0 : i32
    %c0_i32_0 = arith.constant 0 : i32
    %c0_i32_1 = arith.constant 0 : i32
    return %c0_i32, %c0_i32_0 : i32, i32
  }
  func.func @transform_8(%arg0: i32, %arg1: i32) -> (i32, i32) {
    %c0_i32 = arith.constant 0 : i32
    %c0_i32_0 = arith.constant 0 : i32
    %c0_i32_1 = arith.constant 0 : i32
    return %c0_i32, %c0_i32_0 : i32, i32
  }
  func.func @transform_9(%arg0: i32, %arg1: i32) -> (i32, i32) {
    %c0_i32 = arith.constant 0 : i32
    %c0_i32_0 = arith.constant 0 : i32
    %c0_i32_1 = arith.constant 0 : i32
    return %c0_i32, %c0_i32_0 : i32, i32
  }
  func.func @transform_10(%arg0: i32, %arg1: i32) -> (i32, i32) {
    %c0_i32 = arith.constant 0 : i32
    %c0_i32_0 = arith.constant 0 : i32
    %c0_i32_1 = arith.constant 0 : i32
    return %c0_i32, %c0_i32_0 : i32, i32
  }
  func.func @transform_11(%arg0: i32, %arg1: i32) -> (i32, i32) {
    %c0_i32 = arith.constant 0 : i32
    %c0_i32_0 = arith.constant 0 : i32
    %c0_i32_1 = arith.constant 0 : i32
    return %c0_i32, %c0_i32_0 : i32, i32
  }
  func.func @transform_12(%arg0: i32, %arg1: i32) -> (i32, i32) {
    %c0_i32 = arith.constant 0 : i32
    %c0_i32_0 = arith.constant 0 : i32
    %c0_i32_1 = arith.constant 0 : i32
    return %c0_i32, %c0_i32_0 : i32, i32
  }
  func.func @transform_13(%arg0: i32, %arg1: i32) -> (i32, i32, i32) {
    %c0_i32 = arith.constant 0 : i32
    %c0_i32_0 = arith.constant 0 : i32
    return %arg0, %c0_i32, %arg1 : i32, i32, i32
  }
}

</mosaic_0001>

<llo_original>
// kernel: tpu_custom_call.1
$region0: #{tpu_custom_call.1}
  #allocation0 [shape = 'u32[]', space=smem, size = 0x4, offset = 0x4, fixed_abs, tag = 'smem constant byte address 0x4 - core index']
  #allocation1 [shape = 'u32[72,128]{1,0:T(1,128)}', space=vmem, size = 0x9000, scoped, tag = 'internal scratch']
  %s0 = inlined_call_operand.vmem [shape: bf16[1,8,256], index: 0, kind: input, shape index: {}]
  %s1 = inlined_call_operand.vmem [shape: bf16[1,16,64], index: 1, kind: input, shape index: {}]
  %s2 = inlined_call_operand.hbm [shape: f32[64,256], index: 2, kind: input, shape index: {}]
  %s3 = inlined_call_operand.vmem [shape: f32[8,16], index: 3, kind: input, shape index: {}]
  %s4 = inlined_call_operand.vmem [shape: f32[8,1], index: 4, kind: input, shape index: {}]
  %s5 = inlined_call_operand.vmem [shape: f32[8,8], index: 5, kind: input, shape index: {}]
  %s6 = inlined_call_operand.hbm [shape: f32[8,8], index: 6, kind: input, shape index: {}]
  %s7 = inlined_call_operand.vmem [shape: f32[8,1], index: 7, kind: input, shape index: {}]
  %s8 = inlined_call_operand.hbm [shape: f32[8,8], index: 8, kind: input, shape index: {}]
  %s9 = inlined_call_operand.vmem [shape: f32[8,1], index: 9, kind: input, shape index: {}]
  %s10 = inlined_call_operand.vmem [shape: f32[8,8], index: 10, kind: input, shape index: {}]
  %s11 = inlined_call_operand.hbm [shape: f32[8,8], index: 11, kind: input, shape index: {}]
  %s12 = inlined_call_operand.vmem [shape: f32[8,1], index: 12, kind: input, shape index: {}]
  %s13 = inlined_call_operand.hbm [shape: bf16[1,8,256], index: 13, kind: output, shape index: {}]
  %s14 = sld [smem:[#allocation0]]
  $region101: #{tpu_custom_call.1} parent=0
    _
  %s16 = ssub.s32 1, %s14
  %s17 = scalar_select 0, %s16, %s14
  $region1: #{tpu_custom_call.1} parent=0
    #allocation2 [shape = 'u8[65536]{0}', space=vmem, size = 0x10000, scoped, tag = 'input window, operand 2']
    #allocation3 [shape = 's32[2]{0}', space=sflag, size = 0x8, scoped, tag = 'scoped memory for tpu_custom_call.1']
    #allocation4 [shape = 's32[2]{0}', space=sflag, size = 0x8, scoped, tag = 'scoped memory for tpu_custom_call.1']
    #allocation5 [shape = 'u8[4096]{0}', space=vmem, size = 0x1000, scoped, tag = 'input window, operand 6, single buffered']
    #allocation6 [shape = 's32[1]{0}', space=sflag, size = 0x4, scoped, tag = 'scoped memory for tpu_custom_call.1']
    #allocation7 [shape = 'u8[4096]{0}', space=vmem, size = 0x1000, scoped, tag = 'input window, operand 8, single buffered']
    #allocation8 [shape = 'u8[4096]{0}', space=vmem, size = 0x1000, scoped, tag = 'input window, operand 11, single buffered']
    #allocation9 [shape = 's32[1]{0}', space=sflag, size = 0x4, scoped, tag = 'scoped memory for tpu_custom_call.1']
    #allocation10 [shape = 'u8[4096]{0}', space=vmem, size = 0x1000, scoped, tag = 'output window, operand 0']
    %18 = vsyncpa [#allocation3], 0
    %s19 = scalar_lea.sflag [#allocation3], 1
    %20 = vsyncpa %s19, 0
    %21 = vsyncpa [#allocation6], 0
    %22 = vsyncpa [#allocation9], 0
    %23 = vsyncpa [#allocation4], 0
    %s24 = scalar_lea.sflag [#allocation4], 1
    %25 = vsyncpa %s24, 0
    loop: start=0, step=1, limit=4
    $region2: #{tpu_custom_call.1} parent=1 // loop_pre_header
      _
    $region3: #{tpu_custom_call.1} parent=1 // loop_header
      %s27 = sphi 0, %s31
      %p28 = scmp.ge.s32.totalorder %s27, 4
      %s34 = sphi 0, %s46
      %s35 = sphi 0, %s42
      %s36 = sphi 0, %s34
      %s37 = sphi 0, %s35
      %s38 = sphi 0, %s36
      %s39 = sphi 0, %s37
      %s51 = sphi 0, %s53
      %s54 = sphi 0, %s51
      %s55 = sphi 0, %s54
      %s71 = sphi 0, %s55
      %s77 = sphi 0, %s79
      %s80 = sphi 0, %s77
      %s81 = sphi 0, %s80
      %s97 = sphi 0, %s81
      %s103 = sphi 0, %s105
      %s106 = sphi 0, %s103
      %s107 = sphi 0, %s106
      %s123 = sphi 0, %s107
      %s127 = sphi 0, %s127
      %s129 = sphi 0, %s127
      %s130 = sphi 0, %s129
      %s144 = sphi 0, %s130
      %s148 = sphi 0, %s148
      %s150 = sphi 0, %s148
      %s151 = sphi 0, %s150
      %s165 = sphi 0, %s151
      %s169 = sphi 0, %s169
      %s171 = sphi 0, %s169
      %s172 = sphi 0, %s171
      %s186 = sphi 0, %s172
      %s190 = sphi 0, %s190
      %s192 = sphi 0, %s190
      %s193 = sphi 0, %s192
      %s207 = sphi 0, %s193
      %s211 = sphi 0, %s211
      %s213 = sphi 0, %s211
      %s214 = sphi 0, %s213
      %s228 = sphi 0, %s214
      %s232 = sphi 0, %s232
      %s234 = sphi 0, %s232
      %s235 = sphi 0, %s234
      %s249 = sphi 0, %s235
      %s253 = sphi 0, %s253
      %s255 = sphi 0, %s253
      %s256 = sphi 0, %s255
      %s270 = sphi 0, %s256
      %s274 = sphi 0, %s274
      %s276 = sphi 0, %s274
      %s277 = sphi 0, %s276
      %s291 = sphi 0, %s277
      %s295 = sphi 0, %s295
      %s297 = sphi 0, %s295
      %s298 = sphi 0, %s297
      %s312 = sphi 0, %s298
      %s316 = sphi 0, %s316
      %s318 = sphi 0, %s316
      %s319 = sphi 0, %s318
      %s333 = sphi 0, %s319
      %s341 = sphi 0, %s343
      %s344 = sphi 0, %s341
      %s345 = sphi 0, %s344
      %s361 = sphi 0, %s345
    $region4: #{tpu_custom_call.1} parent=1 // loop_header_branch
      %30 = sbr.rel (%p28) target = $region8
    $region5: #{tpu_custom_call.1} parent=1 // loop_body
      %s32 = ssub.s32 %s27, 1
      %s33 = ssub.s32 %s27, 2
      %s40 = sadd.s32 1, %s35
      %p41 = scmp.ge.s32.totalorder %s40, 2
      %s42 = scalar_select %p41, 0, %s40
      %s43 = sadd.s32 1, %s34
      %s44 = scalar_select %p41, %s43, %s34
      %p45 = scmp.ge.s32.totalorder %s44, 1
      %s46 = scalar_select %p45, 0, %s44
      %s47 = ssub.s32 %s34, %s46
      %s48 = ssub.s32 %s35, %s42
      %s49 = sor.u32 %s47, %s48
      %p50 = scmp.eq.s32.totalorder %s49, 0
      %s52 = sadd.s32 %s51, 1
      %s53 = scalar_select %p50, %s51, %s52
      %p56 = pneg %p50
      %p57 = scmp.eq.s32.totalorder %s27, 1
      %p58 = por %p56, %p57
      %p59 = scmp.ne.s32.totalorder %s51, %s54
      %p60 = scmp.eq.s32.totalorder %s27, 0
      %p61 = por %p59, %p60
      %p62 = scmp.ne.s32.totalorder %s51, %s54
      %p63 = scmp.eq.s32.totalorder %s32, 1
      %p64 = por %p62, %p63
      %p65 = scmp.ne.s32.totalorder %s54, %s55
      %p66 = scmp.eq.s32.totalorder %s32, 0
      %p67 = por %p65, %p66
      %p68 = scmp.ne.s32.totalorder %s54, %s55
      %p69 = scmp.eq.s32.totalorder %s33, 1
      %p70 = por %p68, %p69
      %p72 = scmp.ne.s32.totalorder %s55, %s71
      %p73 = scmp.eq.s32.totalorder %s33, 0
      %p74 = por %p72, %p73
      %s75 = ssub.s32 %s34, %s46
      %p76 = scmp.eq.s32.totalorder %s75, 0
      %s78 = sadd.s32 %s77, 1
      %s79 = scalar_select %p76, %s77, %s78
      %p82 = pneg %p76
      %p83 = scmp.eq.s32.totalorder %s27, 1
      %p84 = por %p82, %p83
      %p85 = scmp.ne.s32.totalorder %s77, %s80
      %p86 = scmp.eq.s32.totalorder %s27, 0
      %p87 = por %p85, %p86
      %p88 = scmp.ne.s32.totalorder %s77, %s80
      %p89 = scmp.eq.s32.totalorder %s32, 1
      %p90 = por %p88, %p89
      %p91 = scmp.ne.s32.totalorder %s80, %s81
      %p92 = scmp.eq.s32.totalorder %s32, 0
      %p93 = por %p91, %p92
      %p94 = scmp.ne.s32.totalorder %s80, %s81
      %p95 = scmp.eq.s32.totalorder %s33, 1
      %p96 = por %p94, %p95
      %p98 = scmp.ne.s32.totalorder %s81, %s97
      %p99 = scmp.eq.s32.totalorder %s33, 0
      %p100 = por %p98, %p99
      %s101 = ssub.s32 %s35, %s42
      %p102 = scmp.eq.s32.totalorder %s101, 0
      %s104 = sadd.s32 %s103, 1
      %s105 = scalar_select %p102, %s103, %s104
      %p108 = pneg %p102
      %p109 = scmp.eq.s32.totalorder %s27, 1
      %p110 = por %p108, %p109
      %p111 = scmp.ne.s32.totalorder %s103, %s106
      %p112 = scmp.eq.s32.totalorder %s27, 0
      %p113 = por %p111, %p112
      %p114 = scmp.ne.s32.totalorder %s103, %s106
      %p115 = scmp.eq.s32.totalorder %s32, 1
      %p116 = por %p114, %p115
      %p117 = scmp.ne.s32.totalorder %s106, %s107
      %p118 = scmp.eq.s32.totalorder %s32, 0
      %p119 = por %p117, %p118
      %p120 = scmp.ne.s32.totalorder %s106, %s107
      %p121 = scmp.eq.s32.totalorder %s33, 1
      %p122 = por %p120, %p121
      %p124 = scmp.ne.s32.totalorder %s107, %s123
      %p125 = scmp.eq.s32.totalorder %s33, 0
      %p126 = por %p124, %p125
      %s128 = sadd.s32 %s127, 1
      %p131 = scmp.eq.s32.totalorder %s27, 1
      %p132 = scmp.ne.s32.totalorder %s127, %s129
      %p133 = scmp.eq.s32.totalorder %s27, 0
      %p134 = por %p132, %p133
      %p135 = scmp.ne.s32.totalorder %s127, %s129
      %p136 = scmp.eq.s32.totalorder %s32, 1
      %p137 = por %p135, %p136
      %p138 = scmp.ne.s32.totalorder %s129, %s130
      %p139 = scmp.eq.s32.totalorder %s32, 0
      %p140 = por %p138, %p139
      %p141 = scmp.ne.s32.totalorder %s129, %s130
      %p142 = scmp.eq.s32.totalorder %s33, 1
      %p143 = por %p141, %p142
      %p145 = scmp.ne.s32.totalorder %s130, %s144
      %p146 = scmp.eq.s32.totalorder %s33, 0
      %p147 = por %p145, %p146
      %s149 = sadd.s32 %s148, 1
      %p152 = scmp.eq.s32.totalorder %s27, 1
      %p153 = scmp.ne.s32.totalorder %s148, %s150
      %p154 = scmp.eq.s32.totalorder %s27, 0
      %p155 = por %p153, %p154
      %p156 = scmp.ne.s32.totalorder %s148, %s150
      %p157 = scmp.eq.s32.totalorder %s32, 1
      %p158 = por %p156, %p157
      %p159 = scmp.ne.s32.totalorder %s150, %s151
      %p160 = scmp.eq.s32.totalorder %s32, 0
      %p161 = por %p159, %p160
      %p162 = scmp.ne.s32.totalorder %s150, %s151
      %p163 = scmp.eq.s32.totalorder %s33, 1
      %p164 = por %p162, %p163
      %p166 = scmp.ne.s32.totalorder %s151, %s165
      %p167 = scmp.eq.s32.totalorder %s33, 0
      %p168 = por %p166, %p167
      %s170 = sadd.s32 %s169, 1
      %p173 = scmp.eq.s32.totalorder %s27, 1
      %p174 = scmp.ne.s32.totalorder %s169, %s171
      %p175 = scmp.eq.s32.totalorder %s27, 0
      %p176 = por %p174, %p175
      %p177 = scmp.ne.s32.totalorder %s169, %s171
      %p178 = scmp.eq.s32.totalorder %s32, 1
      %p179 = por %p177, %p178
      %p180 = scmp.ne.s32.totalorder %s171, %s172
      %p181 = scmp.eq.s32.totalorder %s32, 0
      %p182 = por %p180, %p181
      %p183 = scmp.ne.s32.totalorder %s171, %s172
      %p184 = scmp.eq.s32.totalorder %s33, 1
      %p185 = por %p183, %p184
      %p187 = scmp.ne.s32.totalorder %s172, %s186
      %p188 = scmp.eq.s32.totalorder %s33, 0
      %p189 = por %p187, %p188
      %s191 = sadd.s32 %s190, 1
      %p194 = scmp.eq.s32.totalorder %s27, 1
      %p195 = scmp.ne.s32.totalorder %s190, %s192
      %p196 = scmp.eq.s32.totalorder %s27, 0
      %p197 = por %p195, %p196
      %p198 = scmp.ne.s32.totalorder %s190, %s192
      %p199 = scmp.eq.s32.totalorder %s32, 1
      %p200 = por %p198, %p199
      %p201 = scmp.ne.s32.totalorder %s192, %s193
      %p202 = scmp.eq.s32.totalorder %s32, 0
      %p203 = por %p201, %p202
      %p204 = scmp.ne.s32.totalorder %s192, %s193
      %p205 = scmp.eq.s32.totalorder %s33, 1
      %p206 = por %p204, %p205
      %p208 = scmp.ne.s32.totalorder %s193, %s207
      %p209 = scmp.eq.s32.totalorder %s33, 0
      %p210 = por %p208, %p209
      %s212 = sadd.s32 %s211, 1
      %p215 = scmp.eq.s32.totalorder %s27, 1
      %p216 = scmp.ne.s32.totalorder %s211, %s213
      %p217 = scmp.eq.s32.totalorder %s27, 0
      %p218 = por %p216, %p217
      %p219 = scmp.ne.s32.totalorder %s211, %s213
      %p220 = scmp.eq.s32.totalorder %s32, 1
      %p221 = por %p219, %p220
      %p222 = scmp.ne.s32.totalorder %s213, %s214
      %p223 = scmp.eq.s32.totalorder %s32, 0
      %p224 = por %p222, %p223
      %p225 = scmp.ne.s32.totalorder %s213, %s214
      %p226 = scmp.eq.s32.totalorder %s33, 1
      %p227 = por %p225, %p226
      %p229 = scmp.ne.s32.totalorder %s214, %s228
      %p230 = scmp.eq.s32.totalorder %s33, 0
      %p231 = por %p229, %p230
      %s233 = sadd.s32 %s232, 1
      %p236 = scmp.eq.s32.totalorder %s27, 1
      %p237 = scmp.ne.s32.totalorder %s232, %s234
      %p238 = scmp.eq.s32.totalorder %s27, 0
      %p239 = por %p237, %p238
      %p240 = scmp.ne.s32.totalorder %s232, %s234
      %p241 = scmp.eq.s32.totalorder %s32, 1
      %p242 = por %p240, %p241
      %p243 = scmp.ne.s32.totalorder %s234, %s235
      %p244 = scmp.eq.s32.totalorder %s32, 0
      %p245 = por %p243, %p244
      %p246 = scmp.ne.s32.totalorder %s234, %s235
      %p247 = scmp.eq.s32.totalorder %s33, 1
      %p248 = por %p246, %p247
      %p250 = scmp.ne.s32.totalorder %s235, %s249
      %p251 = scmp.eq.s32.totalorder %s33, 0
      %p252 = por %p250, %p251
      %s254 = sadd.s32 %s253, 1
      %p257 = scmp.eq.s32.totalorder %s27, 1
      %p258 = scmp.ne.s32.totalorder %s253, %s255
      %p259 = scmp.eq.s32.totalorder %s27, 0
      %p260 = por %p258, %p259
      %p261 = scmp.ne.s32.totalorder %s253, %s255
      %p262 = scmp.eq.s32.totalorder %s32, 1
      %p263 = por %p261, %p262
      %p264 = scmp.ne.s32.totalorder %s255, %s256
      %p265 = scmp.eq.s32.totalorder %s32, 0
      %p266 = por %p264, %p265
      %p267 = scmp.ne.s32.totalorder %s255, %s256
      %p268 = scmp.eq.s32.totalorder %s33, 1
      %p269 = por %p267, %p268
      %p271 = scmp.ne.s32.totalorder %s256, %s270
      %p272 = scmp.eq.s32.totalorder %s33, 0
      %p273 = por %p271, %p272
      %s275 = sadd.s32 %s274, 1
      %p278 = scmp.eq.s32.totalorder %s27, 1
      %p279 = scmp.ne.s32.totalorder %s274, %s276
      %p280 = scmp.eq.s32.totalorder %s27, 0
      %p281 = por %p279, %p280
      %p282 = scmp.ne.s32.totalorder %s274, %s276
      %p283 = scmp.eq.s32.totalorder %s32, 1
      %p284 = por %p282, %p283
      %p285 = scmp.ne.s32.totalorder %s276, %s277
      %p286 = scmp.eq.s32.totalorder %s32, 0
      %p287 = por %p285, %p286
      %p288 = scmp.ne.s32.totalorder %s276, %s277
      %p289 = scmp.eq.s32.totalorder %s33, 1
      %p290 = por %p288, %p289
      %p292 = scmp.ne.s32.totalorder %s277, %s291
      %p293 = scmp.eq.s32.totalorder %s33, 0
      %p294 = por %p292, %p293
      %s296 = sadd.s32 %s295, 1
      %p299 = scmp.eq.s32.totalorder %s27, 1
      %p300 = scmp.ne.s32.totalorder %s295, %s297
      %p301 = scmp.eq.s32.totalorder %s27, 0
      %p302 = por %p300, %p301
      %p303 = scmp.ne.s32.totalorder %s295, %s297
      %p304 = scmp.eq.s32.totalorder %s32, 1
      %p305 = por %p303, %p304
      %p306 = scmp.ne.s32.totalorder %s297, %s298
      %p307 = scmp.eq.s32.totalorder %s32, 0
      %p308 = por %p306, %p307
      %p309 = scmp.ne.s32.totalorder %s297, %s298
      %p310 = scmp.eq.s32.totalorder %s33, 1
      %p311 = por %p309, %p310
      %p313 = scmp.ne.s32.totalorder %s298, %s312
      %p314 = scmp.eq.s32.totalorder %s33, 0
      %p315 = por %p313, %p314
      %s317 = sadd.s32 %s316, 1
      %p320 = scmp.eq.s32.totalorder %s27, 1
      %p321 = scmp.ne.s32.totalorder %s316, %s318
      %p322 = scmp.eq.s32.totalorder %s27, 0
      %p323 = por %p321, %p322
      %p324 = scmp.ne.s32.totalorder %s316, %s318
      %p325 = scmp.eq.s32.totalorder %s32, 1
      %p326 = por %p324, %p325
      %p327 = scmp.ne.s32.totalorder %s318, %s319
      %p328 = scmp.eq.s32.totalorder %s32, 0
      %p329 = por %p327, %p328
      %p330 = scmp.ne.s32.totalorder %s318, %s319
      %p331 = scmp.eq.s32.totalorder %s33, 1
      %p332 = por %p330, %p331
      %p334 = scmp.ne.s32.totalorder %s319, %s333
      %p335 = scmp.eq.s32.totalorder %s33, 0
      %p336 = por %p334, %p335
      %s337 = ssub.s32 %s34, %s46
      %s338 = ssub.s32 %s35, %s42
      %s339 = sor.u32 %s337, %s338
      %p340 = scmp.eq.s32.totalorder %s339, 0
      %s342 = sadd.s32 %s341, 1
      %s343 = scalar_select %p340, %s341, %s342
      %p346 = pneg %p340
      %p347 = scmp.eq.s32.totalorder %s27, 1
      %p348 = por %p346, %p347
      %p349 = scmp.ne.s32.totalorder %s341, %s344
      %p350 = scmp.eq.s32.totalorder %s27, 0
      %p351 = por %p349, %p350
      %p352 = scmp.ne.s32.totalorder %s341, %s344
      %p353 = scmp.eq.s32.totalorder %s32, 1
      %p354 = por %p352, %p353
      %p355 = scmp.ne.s32.totalorder %s344, %s345
      %p356 = scmp.eq.s32.totalorder %s32, 0
      %p357 = por %p355, %p356
      %p358 = scmp.ne.s32.totalorder %s344, %s345
      %p359 = scmp.eq.s32.totalorder %s33, 1
      %p360 = por %p358, %p359
      %p362 = scmp.ne.s32.totalorder %s345, %s361
      %p363 = scmp.eq.s32.totalorder %s33, 0
      %p364 = por %p362, %p363
      %p365 = scmp.le.s32.totalorder 1, %s27
      %p366 = scmp.lt.s32.totalorder %s27, 3
      %p367 = pnand %p365, %p366
      %p368 = pneg %p367
      // Predicated region
      $region9: #{tpu_custom_call.1} parent=5 // pred_check
        _
      $region10: #{tpu_custom_call.1} parent=5 // pred_check_branch
        %370 = sbr.rel (%p367) target = $region12
      $region11: #{tpu_custom_call.1} parent=5 // pred_region
        %s371 = ssub.s32 %s27, 1
        // Predicated region
        $region13: #{tpu_custom_call.1} parent=11 // pred_check
          %p372 = pneg %p93
        $region14: #{tpu_custom_call.1} parent=11 // pred_check_branch
          %374 = sbr.rel (%p372) target = $region16
        $region15: #{tpu_custom_call.1} parent=11 // pred_region
          %p375 = scmp.lt.s32.totalorder %s36, 0
          %s376 = scalar_select %p375, %s36, 0
          %s377 = smul.addr %s376, 2
          %s378 = smul.addr %s377, 4
          %s379 = scalar_lea.vmem %s1, %s378
        $region16: #{tpu_custom_call.1} parent=11 // pred_fallthru
          _
        // Predicated region
        $region17: #{tpu_custom_call.1} parent=11 // pred_check
          %p380 = pneg %p140
        $region18: #{tpu_custom_call.1} parent=11 // pred_check_branch
          %382 = sbr.rel (%p380) target = $region20
        $region19: #{tpu_custom_call.1} parent=11 // pred_region
          _
        $region20: #{tpu_custom_call.1} parent=11 // pred_fallthru
          _
        // Predicated region
        $region21: #{tpu_custom_call.1} parent=11 // pred_check
          %p383 = pneg %p161
        $region22: #{tpu_custom_call.1} parent=11 // pred_check_branch
          %385 = sbr.rel (%p383) target = $region24
        $region23: #{tpu_custom_call.1} parent=11 // pred_region
          _
        $region24: #{tpu_custom_call.1} parent=11 // pred_fallthru
          _
        // Predicated region
        $region25: #{tpu_custom_call.1} parent=11 // pred_check
          %p386 = pneg %p182
        $region26: #{tpu_custom_call.1} parent=11 // pred_check_branch
          %388 = sbr.rel (%p386) target = $region28
        $region27: #{tpu_custom_call.1} parent=11 // pred_region
          _
        $region28: #{tpu_custom_call.1} parent=11 // pred_fallthru
          _
        // Predicated region
        $region29: #{tpu_custom_call.1} parent=11 // pred_check
          %p389 = pneg %p203
        $region30: #{tpu_custom_call.1} parent=11 // pred_check_branch
          %391 = sbr.rel (%p389) target = $region32
        $region31: #{tpu_custom_call.1} parent=11 // pred_region
          %393 = vsyncadd [#allocation6], 0
          %s395 = sshll.u32 %s6, 4
          %s396 = int_to_ptr.hbm [resolvable:$true] %s395
          %s397 = sshll.u32 [#allocation5], 4
          %s398 = int_to_ptr.vmem [resolvable:$true] %s397
          %400 = dma.hbm_to_vmem [thread:$0]  %s396, 128, %s398, [#allocation6]
        $region32: #{tpu_custom_call.1} parent=11 // pred_fallthru
          _
        // Predicated region
        $region33: #{tpu_custom_call.1} parent=11 // pred_check
          %p401 = pneg %p224
        $region34: #{tpu_custom_call.1} parent=11 // pred_check_branch
          %403 = sbr.rel (%p401) target = $region36
        $region35: #{tpu_custom_call.1} parent=11 // pred_region
          _
        $region36: #{tpu_custom_call.1} parent=11 // pred_fallthru
          _
        // Predicated region
        $region37: #{tpu_custom_call.1} parent=11 // pred_check
          %p404 = pneg %p245
        $region38: #{tpu_custom_call.1} parent=11 // pred_check_branch
          %406 = sbr.rel (%p404) target = $region40
        $region39: #{tpu_custom_call.1} parent=11 // pred_region
          %408 = vsyncadd [#allocation6], 0
          %s410 = sshll.u32 %s8, 4
          %s411 = int_to_ptr.hbm [resolvable:$true] %s410
          %s412 = sshll.u32 [#allocation7], 4
          %s413 = int_to_ptr.vmem [resolvable:$true] %s412
          %415 = dma.hbm_to_vmem [thread:$0]  %s411, 128, %s413, [#allocation6]
        $region40: #{tpu_custom_call.1} parent=11 // pred_fallthru
          _
        // Predicated region
        $region41: #{tpu_custom_call.1} parent=11 // pred_check
          %p416 = pneg %p266
        $region42: #{tpu_custom_call.1} parent=11 // pred_check_branch
          %418 = sbr.rel (%p416) target = $region44
        $region43: #{tpu_custom_call.1} parent=11 // pred_region
          _
        $region44: #{tpu_custom_call.1} parent=11 // pred_fallthru
          _
        // Predicated region
        $region45: #{tpu_custom_call.1} parent=11 // pred_check
          %p419 = pneg %p287
        $region46: #{tpu_custom_call.1} parent=11 // pred_check_branch
          %421 = sbr.rel (%p419) target = $region48
        $region47: #{tpu_custom_call.1} parent=11 // pred_region
          _
        $region48: #{tpu_custom_call.1} parent=11 // pred_fallthru
          _
        // Predicated region
        $region49: #{tpu_custom_call.1} parent=11 // pred_check
          %p422 = pneg %p308
        $region50: #{tpu_custom_call.1} parent=11 // pred_check_branch
          %424 = sbr.rel (%p422) target = $region52
        $region51: #{tpu_custom_call.1} parent=11 // pred_region
          %426 = vsyncadd [#allocation9], 0
          %s428 = sshll.u32 %s11, 4
          %s429 = int_to_ptr.hbm [resolvable:$true] %s428
          %s430 = sshll.u32 [#allocation8], 4
          %s431 = int_to_ptr.vmem [resolvable:$true] %s430
          %433 = dma.hbm_to_vmem [thread:$0]  %s429, 128, %s431, [#allocation9]
        $region52: #{tpu_custom_call.1} parent=11 // pred_fallthru
          _
        // Predicated region
        $region53: #{tpu_custom_call.1} parent=11 // pred_check
          %p434 = pneg %p329
        $region54: #{tpu_custom_call.1} parent=11 // pred_check_branch
          %436 = sbr.rel (%p434) target = $region56
        $region55: #{tpu_custom_call.1} parent=11 // pred_region
          _
        $region56: #{tpu_custom_call.1} parent=11 // pred_fallthru
          _
      $region12: #{tpu_custom_call.1} parent=5 // pred_fallthru
        _
      %p437 = scmp.lt.s32.totalorder %s27, 2
      // Predicated region
      $region57: #{tpu_custom_call.1} parent=5 // pred_check
        %p438 = pneg %p437
      $region58: #{tpu_custom_call.1} parent=5 // pred_check_branch
        %440 = sbr.rel (%p438) target = $region60
      $region59: #{tpu_custom_call.1} parent=5 // pred_region
        // Predicated region
        $region61: #{tpu_custom_call.1} parent=59 // pred_check
          %p441 = pneg %p61
        $region62: #{tpu_custom_call.1} parent=59 // pred_check_branch
          %443 = sbr.rel (%p441) target = $region64
        $region63: #{tpu_custom_call.1} parent=59 // pred_region
          %p444 = scmp.lt.s32.totalorder %s34, 0
          %s445 = scalar_select %p444, %s34, 0
          %p446 = scmp.lt.s32.totalorder %s35, 1
          %s447 = scalar_select %p446, %s35, 1
          %s448 = smul.addr %s445, 2
          %s449 = sadd.s32 %s447, %s448
          %s450 = smul.addr %s449, 4
          %s451 = scalar_lea.vmem %s0, %s450
        $region64: #{tpu_custom_call.1} parent=59 // pred_fallthru
          _
        // Predicated region
        $region65: #{tpu_custom_call.1} parent=59 // pred_check
          %p452 = pneg %p113
        $region66: #{tpu_custom_call.1} parent=59 // pred_check_branch
          %454 = sbr.rel (%p452) target = $region68
        $region67: #{tpu_custom_call.1} parent=59 // pred_region
          %s455 = sand.u32 %s103, 1
          %s456 = scalar_lea.sflag [#allocation3], %s455
          %s457 = sand.u32 %s103, 1
          %s458 = smul.addr %s457, 64
          %s459 = scalar_lea.vmem [#allocation2], %s458
          %461 = vsyncadd %s456, 0
          %s462 = smul.addr %s35, 8
          %s463 = scalar_lea.hbm %s2, %s462
          %s464 = sshll.u32 %s463, 4
          %s465 = int_to_ptr.hbm [resolvable:$true] %s464
          %s466 = sshll.u32 %s459, 4
          %s467 = int_to_ptr.vmem [resolvable:$true] %s466
          %472 = dma.hbm_to_vmem [thread:$0]  %s465, 1024, %s467, %s456, 256, 128, 8
        $region68: #{tpu_custom_call.1} parent=59 // pred_fallthru
          _
      $region60: #{tpu_custom_call.1} parent=5 // pred_fallthru
        _
      %p473 = scmp.le.s32.totalorder 1, %s27
      %p474 = scmp.lt.s32.totalorder %s27, 3
      %p475 = pnand %p473, %p474
      %p476 = pneg %p475
      // Predicated region
      $region69: #{tpu_custom_call.1} parent=5 // pred_check
        _
      $region70: #{tpu_custom_call.1} parent=5 // pred_check_branch
        %478 = sbr.rel (%p475) target = $region72
      $region71: #{tpu_custom_call.1} parent=5 // pred_region
        %s479 = ssub.s32 %s27, 1
        %s480 = sand.u32 %s106, 1
        %s481 = scalar_lea.sflag [#allocation3], %s480
        %s482 = sand.u32 %s106, 1
        %s483 = smul.addr %s482, 64
        %s484 = scalar_lea.vmem [#allocation2], %s483
        // Predicated region
        $region73: #{tpu_custom_call.1} parent=71 // pred_check
          %p485 = pneg %p119
        $region74: #{tpu_custom_call.1} parent=71 // pred_check_branch
          %487 = sbr.rel (%p485) target = $region76
        $region75: #{tpu_custom_call.1} parent=71 // pred_region
          %489 = dma.done %s481, 1024
        $region76: #{tpu_custom_call.1} parent=71 // pred_fallthru
          _
        // Predicated region
        $region77: #{tpu_custom_call.1} parent=71 // pred_check
          %p490 = pneg %p203
        $region78: #{tpu_custom_call.1} parent=71 // pred_check_branch
          %492 = sbr.rel (%p490) target = $region80
        $region79: #{tpu_custom_call.1} parent=71 // pred_region
          %494 = dma.done [#allocation6], 128
        $region80: #{tpu_custom_call.1} parent=71 // pred_fallthru
          _
        // Predicated region
        $region81: #{tpu_custom_call.1} parent=71 // pred_check
          %p495 = pneg %p245
        $region82: #{tpu_custom_call.1} parent=71 // pred_check_branch
          %497 = sbr.rel (%p495) target = $region84
        $region83: #{tpu_custom_call.1} parent=71 // pred_region
          %499 = dma.done [#allocation6], 128
        $region84: #{tpu_custom_call.1} parent=71 // pred_fallthru
          _
        // Predicated region
        $region85: #{tpu_custom_call.1} parent=71 // pred_check
          %p500 = pneg %p308
        $region86: #{tpu_custom_call.1} parent=71 // pred_check_branch
          %502 = sbr.rel (%p500) target = $region88
        $region87: #{tpu_custom_call.1} parent=71 // pred_region
          %504 = dma.done [#allocation9], 128
        $region88: #{tpu_custom_call.1} parent=71 // pred_fallthru
          _
        %p505 = scmp.lt.s32.totalorder %s36, 0
        %s506 = scalar_select %p505, %s36, 0
        %p507 = scmp.lt.s32.totalorder %s37, 1
        %s508 = scalar_select %p507, %s37, 1
        %s509 = smul.addr %s506, 2
        %s510 = sadd.s32 %s508, %s509
        %s511 = smul.addr %s510, 4
        %s512 = scalar_lea.vmem %s0, %s511
        %p513 = pneg %p67
        %p514 = pneg %p64
        %p515 = scmp.lt.s32.totalorder %s36, 0
        %s516 = scalar_select %p515, %s36, 0
        %s517 = smul.addr %s516, 2
        %s518 = smul.addr %s517, 4
        %s519 = scalar_lea.vmem %s1, %s518
        %p520 = pneg %p93
        %p521 = pneg %p90
        %s522 = sand.u32 %s106, 1
        %s523 = scalar_lea.sflag [#allocation3], %s522
        %s524 = sand.u32 %s106, 1
        %s525 = smul.addr %s524, 64
        %s526 = scalar_lea.vmem [#allocation2], %s525
        %p527 = pneg %p119
        %p528 = pneg %p116
        %p529 = pneg %p140
        %p530 = pneg %p137
        %p531 = pneg %p161
        %p532 = pneg %p158
        %p533 = pneg %p182
        %p534 = pneg %p179
        %p535 = pneg %p203
        %p536 = pneg %p200
        %p537 = pneg %p224
        %p538 = pneg %p221
        %p539 = pneg %p245
        %p540 = pneg %p242
        %p541 = pneg %p266
        %p542 = pneg %p263
        %p543 = pneg %p287
        %p544 = pneg %p284
        %p545 = pneg %p308
        %p546 = pneg %p305
        %p547 = pneg %p329
        %p548 = pneg %p326
        %p549 = pneg %p357
        %p550 = pneg %p354
        %s551 = sand.u32 %s344, 1
        %s552 = scalar_lea.sflag [#allocation4], %s551
        %s553 = sand.u32 %s344, 1
        %s554 = smul.addr %s553, 4
        %s555 = scalar_lea.vmem [#allocation10], %s554
        %p556 = scmp.lt.s32.totalorder %s36, 0
        %s557 = scalar_select %p556, %s36, 0
        %p558 = scmp.lt.s32.totalorder %s37, 1
        %s559 = scalar_select %p558, %s37, 1
        %s560 = smul.addr %s557, 2
        %s561 = sadd.s32 %s559, %s560
        %s562 = smul.addr %s561, 4
        %s563 = scalar_lea.vmem %s0, %s562
        %p564 = scmp.lt.s32.totalorder %s36, 0
        %s565 = scalar_select %p564, %s36, 0
        %s566 = smul.addr %s565, 2
        %s567 = smul.addr %s566, 4
        %s568 = scalar_lea.vmem %s1, %s567
        %v569 = vld [vmem:[%s563] sm:$0xf]
        %v570 = vunpack.c.l.bf16 %v569
        %v571 = vld [vmem:[%s568] sm:$0xf]
        %v572 = vld [vmem:[%s568 + $0x4] sm:$0xf]
        %v573 = vunpack.c.l.bf16 %v571
        %v574 = vunpack.c.l.bf16 %v572
        %v575 = vld [vmem:[%s3] sm:$0xff]
        %vm576 = vcmask 130048
        %v578 = vsel %vm576, %v575, 0
        %580 = vmatpush.msra.mxu0 0.0
        %581 = vmatpush.msra.mxu0 0.0
        %582 = vmatpush.msra.mxu0 0.0
        %583 = vmatpush.msra.mxu0 0.0
        %584 = vmatpush.msra.mxu0 0.0
        %585 = vmatpush.msra.mxu0 0.0
        %586 = vmatpush.msra.mxu0 0.0
        %587 = vmatpush.msra.mxu0 0.0
        %588 = vmatpush.msra.mxu0 0.0
        %589 = vmatpush.msra.mxu0 0.0
        %590 = vmatpush.msra.mxu0 0.0
        %591 = vmatpush.msra.mxu0 0.0
        %592 = vmatpush.msra.mxu0 0.0
        %593 = vmatpush.msra.mxu0 0.0
        %594 = vmatpush.msra.mxu0 %v574
        %595 = vmatpush.msra.mxu0 %v573
        %596 = vmatmul.f32.gmra.mxu0 %v578
        %v597 = vpop.f32.mrf.mxu0
        %v598 = vadd.f32 0.0, %v597
        %599 = vdwg.mxu0
        %v600 = vld [vmem:[%s484] sm:$0xff]
        %v601 = vld [vmem:[%s484 + $0x8] sm:$0xff]
        %v602 = vld [vmem:[%s484 + $0x10] sm:$0xff]
        %v603 = vld [vmem:[%s484 + $0x18] sm:$0xff]
        %v604 = vld [vmem:[%s484 + $0x20] sm:$0xff]
        %v605 = vld [vmem:[%s484 + $0x28] sm:$0xff]
        %v606 = vld [vmem:[%s484 + $0x30] sm:$0xff]
        %v607 = vld [vmem:[%s484 + $0x38] sm:$0xff]
        %v608 = vld [vmem:[%s4] sm:$0xff]
        %610 = vset.pattern.permute.xlu0 0
        %611 = vperm.xlu0 %610, %v608
        %v612 = vpop.permute.xlu0 %611
        %vm614 = vcmask 523264
        %v616 = vsel %vm614, %v598, 0
        %618 = vmatpush.msra.mxu0 0.0
        %619 = vmatpush.msra.mxu0 0.0
        %620 = vmatpush.msra.mxu0 0.0
        %621 = vmatpush.msra.mxu0 0.0
        %622 = vmatpush.msra.mxu0 0.0
        %623 = vmatpush.msra.mxu0 0.0
        %624 = vmatpush.msra.mxu0 0.0
        %625 = vmatpush.msra.mxu0 0.0
        %626 = vmatpush.msra.mxu0 %v607
        %627 = vmatpush.msra.mxu0 %v606
        %628 = vmatpush.msra.mxu0 %v605
        %629 = vmatpush.msra.mxu0 %v604
        %630 = vmatpush.msra.mxu0 %v603
        %631 = vmatpush.msra.mxu0 %v602
        %632 = vmatpush.msra.mxu0 %v601
        %633 = vmatpush.msra.mxu0 %v600
        %634 = vmatmul.f32.gmra.mxu0 %v616
        %v635 = vpop.f32.mrf.mxu0
        %v636 = vadd.f32 %v612, %v635
        %637 = vdwg.mxu0
        %v638 = vld [vmem:[%s5] sm:$0xff]
        %v639 = vld [vmem:[#allocation5] sm:$0xff]
        %vm640 = vcmask 64512
        %v642 = vsel %vm640, %v639, 0
        %644 = vmatpush.msra.mxu0 0.0
        %645 = vmatpush.msra.mxu0 0.0
        %646 = vmatpush.msra.mxu0 0.0
        %647 = vmatpush.msra.mxu0 0.0
        %648 = vmatpush.msra.mxu0 0.0
        %649 = vmatpush.msra.mxu0 0.0
        %650 = vmatpush.msra.mxu0 0.0
        %651 = vmatpush.msra.mxu0 0.0
        %652 = vmatpush.msra.mxu0 0.0
        %653 = vmatpush.msra.mxu0 0.0
        %654 = vmatpush.msra.mxu0 0.0
        %655 = vmatpush.msra.mxu0 0.0
        %656 = vmatpush.msra.mxu0 0.0
        %657 = vmatpush.msra.mxu0 0.0
        %658 = vmatpush.msra.mxu0 0.0
        %659 = vmatpush.msra.mxu0 %v636
        %660 = vmatmul.f32.gmra.mxu0 %v642
        %v661 = vpop.f32.mrf.mxu0
        %v662 = vadd.f32 0.0, %v661
        %663 = vdwg.mxu0
        %v665 = vsel %vm640, %v638, 0
        %667 = vmatpush.msra.mxu0 0.0
        %668 = vmatpush.msra.mxu0 0.0
        %669 = vmatpush.msra.mxu0 0.0
        %670 = vmatpush.msra.mxu0 0.0
        %671 = vmatpush.msra.mxu0 0.0
        %672 = vmatpush.msra.mxu0 0.0
        %673 = vmatpush.msra.mxu0 0.0
        %674 = vmatpush.msra.mxu0 0.0
        %675 = vmatpush.msra.mxu0 0.0
        %676 = vmatpush.msra.mxu0 0.0
        %677 = vmatpush.msra.mxu0 0.0
        %678 = vmatpush.msra.mxu0 0.0
        %679 = vmatpush.msra.mxu0 0.0
        %680 = vmatpush.msra.mxu0 0.0
        %681 = vmatpush.msra.mxu0 0.0
        %682 = vmatpush.msra.mxu0 %v570
        %683 = vmatmul.f32.gmra.mxu0 %v665
        %v684 = vpop.f32.mrf.mxu0
        %v685 = vadd.f32 %v662, %v684
        %686 = vdwg.mxu0
        %v687 = vld [vmem:[%s7] sm:$0xff]
        %689 = vset.pattern.permute.xlu0 0
        %690 = vperm.xlu0 %689, %v687
        %v691 = vpop.permute.xlu0 %690
        %v693 = vadd.f32 %v685, %v691
        %v694 = vmax.f32 %v693, 0.0
        %v695 = vld [vmem:[#allocation7] sm:$0xff]
        %v696 = vld [vmem:[%s9] sm:$0xff]
        %698 = vset.pattern.permute.xlu0 0
        %699 = vperm.xlu0 %698, %v696
        %v700 = vpop.permute.xlu0 %699
        %v703 = vsel %vm640, %v695, 0
        %705 = vmatpush.msra.mxu0 0.0
        %706 = vmatpush.msra.mxu0 0.0
        %707 = vmatpush.msra.mxu0 0.0
        %708 = vmatpush.msra.mxu0 0.0
        %709 = vmatpush.msra.mxu0 0.0
        %710 = vmatpush.msra.mxu0 0.0
        %711 = vmatpush.msra.mxu0 0.0
        %712 = vmatpush.msra.mxu0 0.0
        %713 = vmatpush.msra.mxu0 0.0
        %714 = vmatpush.msra.mxu0 0.0
        %715 = vmatpush.msra.mxu0 0.0
        %716 = vmatpush.msra.mxu0 0.0
        %717 = vmatpush.msra.mxu0 0.0
        %718 = vmatpush.msra.mxu0 0.0
        %719 = vmatpush.msra.mxu0 0.0
        %720 = vmatpush.msra.mxu0 %v694
        %721 = vmatmul.f32.gmra.mxu0 %v703
        %v722 = vpop.f32.mrf.mxu0
        %v723 = vadd.f32 %v700, %v722
        %724 = vdwg.mxu0
        %v725 = vxor.u32 %v723, 2147483648
        %v726 = vmul.f32 %v725, 1.442695
        %v727 = vpow.pop %v726
        %v728 = vadd.f32 %v727, 1.0
        %v729 = vrcp.pop %v728
        %v730 = vmul.f32 %v728, %v729
        %v731 = vsub.f32 1.0, %v730
        %v732 = vmul.f32 %v729, %v731
        %v733 = vadd.f32 %v729, %v732
        %vm734 = vweird.f32 %v728
        %vm735 = vweird.f32 %v729
        %vm736 = vmor %vm734, %vm735
        %v737 = vsel %vm736, %v729, %v733
        %v738 = vand.u32 2147483647, %v728
        %vm739 = vcmp.eq.f32.partialorder %v738, 8.507059e+37
        %v740 = vand.u32 %v728, 2147483648
        %v741 = vor.u32 1.1754944e-38, %v740
        %v742 = vsel %vm739, %v741, %v737
        %v743 = vmul.f32 1.0, %v742
        %v744 = vmul.f32 %v636, %v743
        %v745 = vld [vmem:[%s10] sm:$0xff]
        %v746 = vld [vmem:[#allocation8] sm:$0xff]
        %v748 = vsel %vm640, %v746, 0
        %750 = vmatpush.msra.mxu0 0.0
        %751 = vmatpush.msra.mxu0 0.0
        %752 = vmatpush.msra.mxu0 0.0
        %753 = vmatpush.msra.mxu0 0.0
        %754 = vmatpush.msra.mxu0 0.0
        %755 = vmatpush.msra.mxu0 0.0
        %756 = vmatpush.msra.mxu0 0.0
        %757 = vmatpush.msra.mxu0 0.0
        %758 = vmatpush.msra.mxu0 0.0
        %759 = vmatpush.msra.mxu0 0.0
        %760 = vmatpush.msra.mxu0 0.0
        %761 = vmatpush.msra.mxu0 0.0
        %762 = vmatpush.msra.mxu0 0.0
        %763 = vmatpush.msra.mxu0 0.0
        %764 = vmatpush.msra.mxu0 0.0
        %765 = vmatpush.msra.mxu0 %v744
        %766 = vmatmul.f32.gmra.mxu0 %v748
        %v767 = vpop.f32.mrf.mxu0
        %v768 = vadd.f32 0.0, %v767
        %769 = vdwg.mxu0
        %v771 = vsel %vm640, %v745, 0
        %773 = vmatpush.msra.mxu0 0.0
        %774 = vmatpush.msra.mxu0 0.0
        %775 = vmatpush.msra.mxu0 0.0
        %776 = vmatpush.msra.mxu0 0.0
        %777 = vmatpush.msra.mxu0 0.0
        %778 = vmatpush.msra.mxu0 0.0
        %779 = vmatpush.msra.mxu0 0.0
        %780 = vmatpush.msra.mxu0 0.0
        %781 = vmatpush.msra.mxu0 0.0
        %782 = vmatpush.msra.mxu0 0.0
        %783 = vmatpush.msra.mxu0 0.0
        %784 = vmatpush.msra.mxu0 0.0
        %785 = vmatpush.msra.mxu0 0.0
        %786 = vmatpush.msra.mxu0 0.0
        %787 = vmatpush.msra.mxu0 0.0
        %788 = vmatpush.msra.mxu0 %v570
        %789 = vmatmul.f32.gmra.mxu0 %v771
        %v790 = vpop.f32.mrf.mxu0
        %v791 = vadd.f32 %v768, %v790
        %792 = vdwg.mxu0
        %v793 = vld [vmem:[%s12] sm:$0xff]
        %795 = vset.pattern.permute.xlu0 0
        %796 = vperm.xlu0 %795, %v793
        %v797 = vpop.permute.xlu0 %796
        %v799 = vadd.f32 %v791, %v797
        %v800 = vmax.f32 %v799, 0.0
        %v801 = vpack.c.bf16 %v800, %v800
        %802 = vst [vmem:[%s555] sm:$0xf] %v801
        %s803 = sand.u32 %s344, 1
        %s804 = scalar_lea.sflag [#allocation4], %s803
        %s805 = sand.u32 %s344, 1
        %s806 = smul.addr %s805, 4
        %s807 = scalar_lea.vmem [#allocation10], %s806
        // Predicated region
        $region89: #{tpu_custom_call.1} parent=71 // pred_check
          %p808 = pneg %p354
        $region90: #{tpu_custom_call.1} parent=71 // pred_check_branch
          %810 = sbr.rel (%p808) target = $region92
        $region91: #{tpu_custom_call.1} parent=71 // pred_region
          %812 = vsyncadd %s804, 0
          %s813 = smul.addr %s36, 2
          %s814 = sadd.s32 %s37, %s813
          %s815 = smul.addr %s814, 4
          %s816 = scalar_lea.hbm %s13, %s815
          %s818 = sshll.u32 %s807, 4
          %s819 = int_to_ptr.vmem [resolvable:$true] %s818
          %s820 = sshll.u32 %s816, 4
          %s821 = int_to_ptr.hbm [resolvable:$true] %s820
          %823 = dma.vmem_to_hbm [thread:$0]  %s819, 64, %s821, %s804
        $region92: #{tpu_custom_call.1} parent=71 // pred_fallthru
          _
      $region72: #{tpu_custom_call.1} parent=5 // pred_fallthru
        _
      %p824 = scmp.le.s32.totalorder 2, %s27
      // Predicated region
      $region93: #{tpu_custom_call.1} parent=5 // pred_check
        %p825 = pneg %p824
      $region94: #{tpu_custom_call.1} parent=5 // pred_check_branch
        %827 = sbr.rel (%p825) target = $region96
      $region95: #{tpu_custom_call.1} parent=5 // pred_region
        %s828 = ssub.s32 %s27, 2
        // Predicated region
        $region97: #{tpu_custom_call.1} parent=95 // pred_check
          %p829 = pneg %p360
        $region98: #{tpu_custom_call.1} parent=95 // pred_check_branch
          %831 = sbr.rel (%p829) target = $region100
        $region99: #{tpu_custom_call.1} parent=95 // pred_region
          %s832 = sand.u32 %s345, 1
          %s833 = scalar_lea.sflag [#allocation4], %s832
          %s834 = sand.u32 %s345, 1
          %s835 = smul.addr %s834, 4
          %s836 = scalar_lea.vmem [#allocation10], %s835
          %838 = dma.done %s833, 64
        $region100: #{tpu_custom_call.1} parent=95 // pred_fallthru
          _
      $region96: #{tpu_custom_call.1} parent=5 // pred_fallthru
        _
    $region6: #{tpu_custom_call.1} parent=1 // loop_footer
      %s31 = sadd.s32 1, %s27
    $region7: #{tpu_custom_call.1} parent=1 // loop_footer_branch
      %26 = sbr.rel target = $region3
    $region8: #{tpu_custom_call.1} parent=1 // loop_exit
      _
    %839 = vsyncpa [#allocation3], 1
    %s840 = scalar_lea.sflag [#allocation3], 1
    %841 = vsyncpa %s840, 1
    %842 = vsyncpa [#allocation6], 1
    %843 = vsyncpa [#allocation9], 1
    %844 = vsyncpa [#allocation4], 1
    %s845 = scalar_lea.sflag [#allocation4], 1
    %846 = vsyncpa %s845, 1

</llo_original>
